<compile_context>
chip_gen: v5e
topology: v5e:2x2
jax: 0.10.0
libtpu: 0.0.40
codegen_flags: <defaults>
</compile_context>

<pallas_src>
import jax
import jax.numpy as jnp
from jax.experimental import pallas as pl
from jax.experimental.pallas import tpu as pltpu

EPS = 1e-8
CANCEL_RATE_EVAL = 0.05
ACCEPT_RATE_EVAL = 0.75


def safety_net_kernel(bslab_ref, rhs_ref, out_ref, scal_ref):
    f32 = jnp.float32
    B = bslab_ref.shape[0]
    CT = rhs_ref.shape[0]              # C + T
    T = rhs_ref.shape[1] // 4
    out_w = out_ref.shape[1]

    bslab = bslab_ref[...]             # (B, C+T+3)
    lhs = bslab[:, 0:CT]               # [category | collection_thresholds]
    invc = bslab[:, CT:CT + 1]         # (B, 1)
    price = bslab[:, CT + 1:CT + 2]    # (B, 1)
    cancel = bslab[:, CT + 2:CT + 3]   # (B, 1)

    # ---- single MXU op: block matmul yields all four (B, T) intermediates ----
    prod = jnp.dot(lhs, rhs_ref[...], preferred_element_type=f32)   # (B, 4T)
    inv_bt = prod[:, 0:T]              # cat @ (poisson + eps)
    crate_bt = prod[:, T:2 * T]        # cancel-rate belief per batch row
    acc_params_bt = prod[:, 2 * T:3 * T]   # cat @ cumsum(thresholds_norm)
    acc_coll = prod[:, 3 * T:4 * T]    # cumsum(collection_thresholds)

    inv_bt_eps = inv_bt + EPS
    rej_coll = 1.0 - acc_coll

    acc_pct_bt = acc_coll * inv_bt_eps
    acc_pct_b = jnp.sum(acc_pct_bt, axis=1, keepdims=True)           # (B, 1)
    rej_pct_b = 1.0 - acc_pct_b
    # divides -> EUP reciprocal (approx) * numerator.  No extra EPS guard on
    # acc_pct_b to match the torch reference (which also has none).
    total_demand_b = pl.reciprocal(acc_pct_b, approx=True)
    trunc_orders_bt = (rej_coll * inv_bt_eps) * pl.reciprocal(rej_pct_b + EPS,
                                                              approx=True)
    trunc_demand_b = total_demand_b - 1.0
    trunc_demand_bt = trunc_demand_b * trunc_orders_bt
    est_total_demand = jnp.sum(total_demand_b)

    # arrival probability (no-eps inventory distribution, eps-ed cumsum)
    arrival_unnormed = inv_bt * (acc_coll + EPS)
    arr_sum_b = jnp.sum(arrival_unnormed, axis=1, keepdims=True)
    arrival = arrival_unnormed * pl.reciprocal(arr_sum_b, approx=True)
    log_arrival = jnp.log(arrival + EPS)

    # cancel-rate beliefs per batch row
    fill_bt = 1.0 - crate_bt
    crate_b = jnp.sum(crate_bt * invc, axis=1, keepdims=True)        # (B, 1)
    fill_b = 1.0 - crate_b
    # column order matches torch.cat((fill, cancel), 1): col0=log fill, col1=log cancel
    log_cancel = jnp.log(jnp.concatenate([fill_b, crate_b], axis=1) + EPS)  # (B, 2)

    # truncated (unobserved) demand estimates
    trunc_accept = trunc_demand_bt * acc_params_bt
    trunc_cancel = trunc_accept * crate_bt
    trunc_fill = trunc_accept * fill_bt
    trunc_rev = trunc_fill * price

    trunc_rev_sum = jnp.sum(trunc_rev)
    trunc_cancel_sum = jnp.sum(trunc_cancel)
    trunc_fill_sum = jnp.sum(trunc_fill)
    trunc_accept_sum = jnp.sum(trunc_accept)

    # observed batch estimates
    fill_obs = 1.0 - cancel
    acc_inv_bt = invc * acc_params_bt
    batch_cancel_b = jnp.sum(cancel * acc_inv_bt, axis=1, keepdims=True)
    batch_fill_b = jnp.sum(fill_obs * acc_inv_bt, axis=1, keepdims=True)
    batch_accept_b = jnp.sum(acc_inv_bt, axis=1, keepdims=True)
    batch_rev_b = price * batch_fill_b

    batch_fill_sum = jnp.sum(batch_fill_b)
    batch_rev_sum = jnp.sum(batch_rev_b)
    batch_cancel_sum = jnp.sum(batch_cancel_b)
    batch_accept_sum = jnp.sum(batch_accept_b)

    # ---- outputs -----------------------------------------------------------
    # Lane-dense slab -> one unmasked full-width vector store + one writeback DMA.
    pieces = [arrival, log_arrival, log_cancel]
    pad_w = out_w - (2 * T + 2)
    if pad_w > 0:
        pieces.append(jnp.zeros((B, pad_w), jnp.float32))
    out_ref[...] = jnp.concatenate(pieces, axis=1)

    # Scalar losses travel the scalar/SMEM path (no vreg packing, no masked store).
    scal_ref[0] = -(1.0 / 50000.0) * (trunc_rev_sum + batch_rev_sum)
    scal_ref[1] = (trunc_cancel_sum + batch_cancel_sum
                   - (trunc_accept_sum + batch_accept_sum) * CANCEL_RATE_EVAL)
    scal_ref[2] = (1.0 / 7.0) * ((trunc_accept_sum + batch_accept_sum)
                                 * ACCEPT_RATE_EVAL
                                 - trunc_fill_sum - batch_fill_sum)
    scal_ref[3] = est_total_demand
    scal_ref[4] = batch_cancel_sum - batch_accept_sum * CANCEL_RATE_EVAL
    scal_ref[5] = (1.0 / 7.0) * (batch_accept_sum * ACCEPT_RATE_EVAL
                                 - batch_fill_sum)
    scal_ref[6] = 0.0   # deterministic padding of the SMEM output
    scal_ref[7] = 0.0


def init_params(C, T, key, inventory_initializer=3.0,
                cancel_coef_initializer=-0.2, cancel_intercept_initializer=0.3,
                price_initializer=1.0):
    starting_thresholds = jax.random.uniform(key, (C, T), jnp.float32, 0.1, 1.0)
    return dict(
        thresholds_raw_matrix=starting_thresholds,
        inventory_lam_est=jnp.full((C,), inventory_initializer, jnp.float32),
        cancel_coef_est=jnp.full((C,), cancel_coef_initializer, jnp.float32),
        cancel_intercept_est=jnp.full((C,), cancel_intercept_initializer, jnp.float32),
        prices_est=jnp.full((C,), price_initializer, jnp.float32),
        demand_distribution_est=jnp.full((C,), 1.0 / C, jnp.float32),
    )


def derived_matrices(params, T):
    """Parameter setup (glue, batch-invariant): Poisson pmf, cancel-rate belief,
    demand distribution, normalized + cumsum'd thresholds."""
    lam = params["inventory_lam_est"]                     # (C,)
    t = jnp.arange(T, dtype=jnp.float32)
    t_fact = jnp.cumprod(jnp.maximum(t, 1.0))             # t! = [1,1,2,6,...]
    poisson = ((lam[:, None] ** t[None, :]) / t_fact[None, :]
               * jnp.exp(-lam)[:, None])
    inv_raw_est = poisson + EPS                           # (C, T)

    coef_neg = jnp.minimum(params["cancel_coef_est"], 0.0)     # clamp(max=0)
    z = (params["cancel_intercept_est"][:, None]
         + t[None, :] * coef_neg[:, None])
    cancel_rate_cxt = 1.0 - 1.0 / (1.0 + jnp.exp(z))      # (C, T)

    thraw = params["thresholds_raw_matrix"]
    th_norm = thraw / jnp.sum(thraw, axis=1, keepdims=True)     # normalize_JK
    acc_prob_cxt = jnp.cumsum(th_norm, axis=1)            # (C, T)

    demand = params["demand_distribution_est"][None, :]   # (1, C)
    return inv_raw_est, cancel_rate_cxt, acc_prob_cxt, demand


def _vmem_spec():
    return pl.BlockSpec(memory_space=pltpu.MemorySpace.VMEM)


def safety_net_forward(params, category, inv_count, price, cancel,
                       collection_thresholds):
    f32 = jnp.float32
    B, C = category.shape
    T = collection_thresholds.shape[1]

    inv_raw_est, cancel_rate_cxt, acc_prob_cxt, demand = derived_matrices(params, T)

    # Batch-invariant block-RHS so ONE matmul produces all four (B, T) pieces:
    #   [ poisson+eps | cancel_rate | cumsum(th_norm) |  0  ]   rows 0..C-1
    #   [      0      |      0      |        0        | tri ]   rows C..C+T-1
    tri = (jnp.arange(T)[:, None] <= jnp.arange(T)[None, :]).astype(f32)  # cumsum
    rhs_top = jnp.concatenate(
        [inv_raw_est, cancel_rate_cxt, acc_prob_cxt, jnp.zeros((C, T), f32)], axis=1)
    rhs_bot = jnp.concatenate([jnp.zeros((T, 3 * T), f32), tri], axis=1)
    rhs = jnp.concatenate([rhs_top, rhs_bot], axis=0)                 # (C+T, 4T)

    # Packed batch slab: one input DMA for all per-batch data.
    bslab = jnp.concatenate(
        [category.astype(f32),
         collection_thresholds.astype(f32),
         inv_count.reshape(B, 1).astype(f32),
         price.reshape(B, 1).astype(f32),
         cancel.reshape(B, 1).astype(f32)], axis=1)                   # (B, C+T+3)

    out_w = max(128, ((2 * T + 2 + 127) // 128) * 128)   # lane-dense output width

    out_shapes = (
        jax.ShapeDtypeStruct((B, out_w), f32),   # [arrival | log_arrival | log_cancel | pad]
        jax.ShapeDtypeStruct((8,), f32),         # packed scalar losses (SMEM)
    )

    slab, scal = pl.pallas_call(
        safety_net_kernel,
        out_shape=out_shapes,
        in_specs=[_vmem_spec(), _vmem_spec()],
        out_specs=(
            pl.BlockSpec(memory_space=pltpu.MemorySpace.VMEM),
            pl.BlockSpec(memory_space=pltpu.MemorySpace.SMEM),
        ),
    )(bslab, rhs)

    arrival = slab[:, 0:T]
    log_arrival = slab[:, T:2 * T]
    log_cancel = slab[:, 2 * T:2 * T + 2]
    # batch-invariant: log category prob computed outside the hot path
    log_category = jnp.broadcast_to(jnp.log(demand + EPS), (B, C))

    new_objective_loss = scal[0]
    new_cancel_constraint_loss = scal[1]
    new_accept_constraint_loss = scal[2]
    estimated_batch_total_demand = scal[3]
    observed_cancel_constraint_loss = scal[4]
    observed_accept_constraint_loss = scal[5]
    lp_infeasible = 0

    return (new_objective_loss, new_cancel_constraint_loss,
            new_accept_constraint_loss, arrival, log_arrival, log_cancel,
            log_category, estimated_batch_total_demand,
            observed_cancel_constraint_loss, observed_accept_constraint_loss,
            lp_infeasible)


if __name__ == "__main__":
    B, C, T = 8, 8, 16   # nBatch, nKnapsackCategories, nThresholds
    key = jax.random.PRNGKey(0)
    k_th, k_cat, k_coll, k_price, k_cancel = jax.random.split(key, 5)

    params = init_params(C, T, k_th)

    cat_idx = jax.random.randint(k_cat, (B,), 0, C)
    category = jax.nn.one_hot(cat_idx, C, dtype=jnp.float32)       # (B, C)
    coll_raw = jax.random.uniform(k_coll, (B, T), jnp.float32, 0.1, 1.0)
    collection_thresholds = coll_raw / jnp.sum(coll_raw, axis=1, keepdims=True)
    price = jax.random.uniform(k_price, (B,), jnp.float32, 1.0, 5.0)
    cancel = (jax.random.uniform(k_cancel, (B,)) < 0.2).astype(jnp.float32)
    inv_count = jnp.ones((B, 1), jnp.float32)

    outs = safety_net_forward(params, category, inv_count, price, cancel,
                              collection_thresholds)
    jax.block_until_ready(outs[:10])   # outs[10] is the python int lp_infeasible
    print("KERNEL_OK")
</pallas_src>

<mosaic_0001>
module attributes {stable_mosaic.version = 11 : i64} {
  func.func @safety_net_kernel(%arg0: memref<8x27xf32, #tpu.memory_space<vmem>>, %arg1: memref<24x64xf32, #tpu.memory_space<vmem>>, %arg2: memref<8x128xf32, #tpu.memory_space<vmem>>, %arg3: memref<8xf32, #tpu.memory_space<smem>>) attributes {dimension_semantics = [], scalar_prefetch = 0 : i64, scratch_operands = 0 : i64, tpu.core_type = #tpu.core_type<tc>} {
    %c0 = arith.constant 0 : index
    %c0_0 = arith.constant 0 : index
    %0 = vector.load %arg0[%c0, %c0_0] : memref<8x27xf32, #tpu.memory_space<vmem>>, vector<8x27xf32>
    %1 = vector.extract_strided_slice %0 {offsets = [0, 0], sizes = [8, 24], strides = [1, 1]} : vector<8x27xf32> to vector<8x24xf32>
    %2 = vector.extract_strided_slice %0 {offsets = [0, 24], sizes = [8, 1], strides = [1, 1]} : vector<8x27xf32> to vector<8x1xf32>
    %3 = vector.extract_strided_slice %0 {offsets = [0, 25], sizes = [8, 1], strides = [1, 1]} : vector<8x27xf32> to vector<8x1xf32>
    %4 = vector.extract_strided_slice %0 {offsets = [0, 26], sizes = [8, 1], strides = [1, 1]} : vector<8x27xf32> to vector<8x1xf32>
    %c0_1 = arith.constant 0 : index
    %c0_2 = arith.constant 0 : index
    %5 = vector.load %arg1[%c0_1, %c0_2] : memref<24x64xf32, #tpu.memory_space<vmem>>, vector<24x64xf32>
    %cst = arith.constant dense<0.000000e+00> : vector<8x64xf32>
    %6 = tpu.matmul %1, %5, %cst {dimension_numbers = #tpu.dot_dimension_numbers<[1], [0], [0], [1], [0, 0, 1, 1], [], []>} : vector<8x24xf32>, vector<24x64xf32>, vector<8x64xf32> -> vector<8x64xf32>
    %7 = vector.extract_strided_slice %6 {offsets = [0, 0], sizes = [8, 16], strides = [1, 1]} : vector<8x64xf32> to vector<8x16xf32>
    %8 = vector.extract_strided_slice %6 {offsets = [0, 16], sizes = [8, 16], strides = [1, 1]} : vector<8x64xf32> to vector<8x16xf32>
    %9 = vector.extract_strided_slice %6 {offsets = [0, 32], sizes = [8, 16], strides = [1, 1]} : vector<8x64xf32> to vector<8x16xf32>
    %10 = vector.extract_strided_slice %6 {offsets = [0, 48], sizes = [8, 16], strides = [1, 1]} : vector<8x64xf32> to vector<8x16xf32>
    %cst_3 = arith.constant 9.99999993E-9 : f32
    %11 = vector.broadcast %cst_3 : f32 to vector<8x16xf32>
    %12 = arith.addf %7, %11 : vector<8x16xf32>
    %cst_4 = arith.constant 1.000000e+00 : f32
    %13 = vector.broadcast %cst_4 : f32 to vector<8x16xf32>
    %14 = arith.subf %13, %10 : vector<8x16xf32>
    %15 = arith.mulf %10, %12 : vector<8x16xf32>
    %cst_5 = arith.constant dense<0.000000e+00> : vector<8xf32>
    %16 = vector.multi_reduction <add>, %15, %cst_5 [1] : vector<8x16xf32> to vector<8xf32>
    %17 = vector.shape_cast %16 : vector<8xf32> to vector<8x1xf32>
    %cst_6 = arith.constant 1.000000e+00 : f32
    %18 = vector.broadcast %cst_6 : f32 to vector<8x1xf32>
    %19 = arith.subf %18, %17 : vector<8x1xf32>
    %20 = tpu.reciprocal %17 {approx = true} : vector<8x1xf32> -> vector<8x1xf32>
    %21 = arith.mulf %14, %12 : vector<8x16xf32>
    %cst_7 = arith.constant 9.99999993E-9 : f32
    %22 = vector.broadcast %cst_7 : f32 to vector<8x1xf32>
    %23 = arith.addf %19, %22 : vector<8x1xf32>
    %24 = tpu.reciprocal %23 {approx = true} : vector<8x1xf32> -> vector<8x1xf32>
    %25 = vector.broadcast %24 : vector<8x1xf32> to vector<8x16xf32>
    %26 = arith.mulf %21, %25 : vector<8x16xf32>
    %cst_8 = arith.constant 1.000000e+00 : f32
    %27 = vector.broadcast %cst_8 : f32 to vector<8x1xf32>
    %28 = arith.subf %20, %27 : vector<8x1xf32>
    %29 = vector.broadcast %28 : vector<8x1xf32> to vector<8x16xf32>
    %30 = arith.mulf %29, %26 : vector<8x16xf32>
    %31 = vector.shape_cast %20 : vector<8x1xf32> to vector<1x8x1xf32>
    %cst_9 = arith.constant dense<0.000000e+00> : vector<1xf32>
    %32 = vector.multi_reduction <add>, %31, %cst_9 [1, 2] : vector<1x8x1xf32> to vector<1xf32>
    %33 = vector.shape_cast %32 : vector<1xf32> to vector<1x1x1xf32>
    %34 = vector.extract %33[0, 0, 0] : f32 from vector<1x1x1xf32>
    %cst_10 = arith.constant 9.99999993E-9 : f32
    %35 = vector.broadcast %cst_10 : f32 to vector<8x16xf32>
    %36 = arith.addf %10, %35 : vector<8x16xf32>
    %37 = arith.mulf %7, %36 : vector<8x16xf32>
    %cst_11 = arith.constant dense<0.000000e+00> : vector<8xf32>
    %38 = vector.multi_reduction <add>, %37, %cst_11 [1] : vector<8x16xf32> to vector<8xf32>
    %39 = vector.shape_cast %38 : vector<8xf32> to vector<8x1xf32>
    %40 = tpu.reciprocal %39 {approx = true} : vector<8x1xf32> -> vector<8x1xf32>
    %41 = vector.broadcast %40 : vector<8x1xf32> to vector<8x16xf32>
    %42 = arith.mulf %37, %41 : vector<8x16xf32>
    %cst_12 = arith.constant 9.99999993E-9 : f32
    %43 = vector.broadcast %cst_12 : f32 to vector<8x16xf32>
    %44 = arith.addf %42, %43 : vector<8x16xf32>
    %45 = math.log %44 : vector<8x16xf32>
    %cst_13 = arith.constant 1.000000e+00 : f32
    %46 = vector.broadcast %cst_13 : f32 to vector<8x16xf32>
    %47 = arith.subf %46, %8 : vector<8x16xf32>
    %48 = vector.broadcast %2 : vector<8x1xf32> to vector<8x16xf32>
    %49 = arith.mulf %8, %48 : vector<8x16xf32>
    %cst_14 = arith.constant dense<0.000000e+00> : vector<8xf32>
    %50 = vector.multi_reduction <add>, %49, %cst_14 [1] : vector<8x16xf32> to vector<8xf32>
    %51 = vector.shape_cast %50 : vector<8xf32> to vector<8x1xf32>
    %cst_15 = arith.constant 1.000000e+00 : f32
    %52 = vector.broadcast %cst_15 : f32 to vector<8x1xf32>
    %53 = arith.subf %52, %51 : vector<8x1xf32>
    %54 = tpu.concatenate %53, %51 in 1 : vector<8x1xf32>, vector<8x1xf32> -> vector<8x2xf32>
    %cst_16 = arith.constant 9.99999993E-9 : f32
    %55 = vector.broadcast %cst_16 : f32 to vector<8x2xf32>
    %56 = arith.addf %54, %55 : vector<8x2xf32>
    %57 = math.log %56 : vector<8x2xf32>
    %58 = arith.mulf %30, %9 : vector<8x16xf32>
    %59 = arith.mulf %58, %8 : vector<8x16xf32>
    %60 = arith.mulf %58, %47 : vector<8x16xf32>
    %61 = vector.broadcast %3 : vector<8x1xf32> to vector<8x16xf32>
    %62 = arith.mulf %60, %61 : vector<8x16xf32>
    %63 = vector.shape_cast %62 : vector<8x16xf32> to vector<1x8x16xf32>
    %cst_17 = arith.constant dense<0.000000e+00> : vector<1xf32>
    %64 = vector.multi_reduction <add>, %63, %cst_17 [1, 2] : vector<1x8x16xf32> to vector<1xf32>
    %65 = vector.shape_cast %64 : vector<1xf32> to vector<1x1x1xf32>
    %66 = vector.extract %65[0, 0, 0] : f32 from vector<1x1x1xf32>
    %67 = vector.shape_cast %59 : vector<8x16xf32> to vector<1x8x16xf32>
    %cst_18 = arith.constant dense<0.000000e+00> : vector<1xf32>
    %68 = vector.multi_reduction <add>, %67, %cst_18 [1, 2] : vector<1x8x16xf32> to vector<1xf32>
    %69 = vector.shape_cast %68 : vector<1xf32> to vector<1x1x1xf32>
    %70 = vector.extract %69[0, 0, 0] : f32 from vector<1x1x1xf32>
    %71 = vector.shape_cast %60 : vector<8x16xf32> to vector<1x8x16xf32>
    %cst_19 = arith.constant dense<0.000000e+00> : vector<1xf32>
    %72 = vector.multi_reduction <add>, %71, %cst_19 [1, 2] : vector<1x8x16xf32> to vector<1xf32>
    %73 = vector.shape_cast %72 : vector<1xf32> to vector<1x1x1xf32>
    %74 = vector.extract %73[0, 0, 0] : f32 from vector<1x1x1xf32>
    %75 = vector.shape_cast %58 : vector<8x16xf32> to vector<1x8x16xf32>
    %cst_20 = arith.constant dense<0.000000e+00> : vector<1xf32>
    %76 = vector.multi_reduction <add>, %75, %cst_20 [1, 2] : vector<1x8x16xf32> to vector<1xf32>
    %77 = vector.shape_cast %76 : vector<1xf32> to vector<1x1x1xf32>
    %78 = vector.extract %77[0, 0, 0] : f32 from vector<1x1x1xf32>
    %cst_21 = arith.constant 1.000000e+00 : f32
    %79 = vector.broadcast %cst_21 : f32 to vector<8x1xf32>
    %80 = arith.subf %79, %4 : vector<8x1xf32>
    %81 = vector.broadcast %2 : vector<8x1xf32> to vector<8x16xf32>
    %82 = arith.mulf %81, %9 : vector<8x16xf32>
    %83 = vector.broadcast %4 : vector<8x1xf32> to vector<8x16xf32>
    %84 = arith.mulf %83, %82 : vector<8x16xf32>
    %cst_22 = arith.constant dense<0.000000e+00> : vector<8xf32>
    %85 = vector.multi_reduction <add>, %84, %cst_22 [1] : vector<8x16xf32> to vector<8xf32>
    %86 = vector.shape_cast %85 : vector<8xf32> to vector<8x1xf32>
    %87 = vector.broadcast %80 : vector<8x1xf32> to vector<8x16xf32>
    %88 = arith.mulf %87, %82 : vector<8x16xf32>
    %cst_23 = arith.constant dense<0.000000e+00> : vector<8xf32>
    %89 = vector.multi_reduction <add>, %88, %cst_23 [1] : vector<8x16xf32> to vector<8xf32>
    %90 = vector.shape_cast %89 : vector<8xf32> to vector<8x1xf32>
    %cst_24 = arith.constant dense<0.000000e+00> : vector<8xf32>
    %91 = vector.multi_reduction <add>, %82, %cst_24 [1] : vector<8x16xf32> to vector<8xf32>
    %92 = vector.shape_cast %91 : vector<8xf32> to vector<8x1xf32>
    %93 = arith.mulf %3, %90 : vector<8x1xf32>
    %94 = vector.shape_cast %90 : vector<8x1xf32> to vector<1x8x1xf32>
    %cst_25 = arith.constant dense<0.000000e+00> : vector<1xf32>
    %95 = vector.multi_reduction <add>, %94, %cst_25 [1, 2] : vector<1x8x1xf32> to vector<1xf32>
    %96 = vector.shape_cast %95 : vector<1xf32> to vector<1x1x1xf32>
    %97 = vector.extract %96[0, 0, 0] : f32 from vector<1x1x1xf32>
    %98 = vector.shape_cast %93 : vector<8x1xf32> to vector<1x8x1xf32>
    %cst_26 = arith.constant dense<0.000000e+00> : vector<1xf32>
    %99 = vector.multi_reduction <add>, %98, %cst_26 [1, 2] : vector<1x8x1xf32> to vector<1xf32>
    %100 = vector.shape_cast %99 : vector<1xf32> to vector<1x1x1xf32>
    %101 = vector.extract %100[0, 0, 0] : f32 from vector<1x1x1xf32>
    %102 = vector.shape_cast %86 : vector<8x1xf32> to vector<1x8x1xf32>
    %cst_27 = arith.constant dense<0.000000e+00> : vector<1xf32>
    %103 = vector.multi_reduction <add>, %102, %cst_27 [1, 2] : vector<1x8x1xf32> to vector<1xf32>
    %104 = vector.shape_cast %103 : vector<1xf32> to vector<1x1x1xf32>
    %105 = vector.extract %104[0, 0, 0] : f32 from vector<1x1x1xf32>
    %106 = vector.shape_cast %92 : vector<8x1xf32> to vector<1x8x1xf32>
    %cst_28 = arith.constant dense<0.000000e+00> : vector<1xf32>
    %107 = vector.multi_reduction <add>, %106, %cst_28 [1, 2] : vector<1x8x1xf32> to vector<1xf32>
    %108 = vector.shape_cast %107 : vector<1xf32> to vector<1x1x1xf32>
    %109 = vector.extract %108[0, 0, 0] : f32 from vector<1x1x1xf32>
    %cst_29 = arith.constant 0.000000e+00 : f32
    %110 = vector.broadcast %cst_29 : f32 to vector<8x94xf32>
    %111 = tpu.concatenate %42, %45, %57, %110 in 1 : vector<8x16xf32>, vector<8x16xf32>, vector<8x2xf32>, vector<8x94xf32> -> vector<8x128xf32>
    %c0_30 = arith.constant 0 : index
    %c0_31 = arith.constant 0 : index
    %112 = vector.load %arg2[%c0_30, %c0_31] : memref<8x128xf32, #tpu.memory_space<vmem>>, vector<8x128xf32>
    tpu.vector_store %arg2[%c0_30, %c0_31], %111 {strides = array<i32>} : memref<8x128xf32, #tpu.memory_space<vmem>>, vector<8x128xf32>,
    %113 = arith.addf %66, %101 : f32
    %cst_32 = arith.constant -2.000000e-05 : f32
    %114 = arith.mulf %cst_32, %113 : f32
    %c0_33 = arith.constant 0 : index
    %115 = memref.load %arg3[%c0_33] : memref<8xf32, #tpu.memory_space<smem>>
    memref.store %114, %arg3[%c0_33] : memref<8xf32, #tpu.memory_space<smem>>
    %116 = arith.addf %70, %105 : f32
    %117 = arith.addf %78, %109 : f32
    %cst_34 = arith.constant 5.000000e-02 : f32
    %118 = arith.mulf %117, %cst_34 : f32
    %119 = arith.subf %116, %118 : f32
    %c1 = arith.constant 1 : index
    %120 = memref.load %arg3[%c1] : memref<8xf32, #tpu.memory_space<smem>>
    memref.store %119, %arg3[%c1] : memref<8xf32, #tpu.memory_space<smem>>
    %121 = arith.addf %78, %109 : f32
    %cst_35 = arith.constant 7.500000e-01 : f32
    %122 = arith.mulf %121, %cst_35 : f32
    %123 = arith.subf %122, %74 : f32
    %124 = arith.subf %123, %97 : f32
    %cst_36 = arith.constant 0.142857149 : f32
    %125 = arith.mulf %cst_36, %124 : f32
    %c2 = arith.constant 2 : index
    %126 = memref.load %arg3[%c2] : memref<8xf32, #tpu.memory_space<smem>>
    memref.store %125, %arg3[%c2] : memref<8xf32, #tpu.memory_space<smem>>
    %c3 = arith.constant 3 : index
    %127 = memref.load %arg3[%c3] : memref<8xf32, #tpu.memory_space<smem>>
    memref.store %34, %arg3[%c3] : memref<8xf32, #tpu.memory_space<smem>>
    %cst_37 = arith.constant 5.000000e-02 : f32
    %128 = arith.mulf %109, %cst_37 : f32
    %129 = arith.subf %105, %128 : f32
    %c4 = arith.constant 4 : index
    %130 = memref.load %arg3[%c4] : memref<8xf32, #tpu.memory_space<smem>>
    memref.store %129, %arg3[%c4] : memref<8xf32, #tpu.memory_space<smem>>
    %cst_38 = arith.constant 7.500000e-01 : f32
    %131 = arith.mulf %109, %cst_38 : f32
    %132 = arith.subf %131, %97 : f32
    %cst_39 = arith.constant 0.142857149 : f32
    %133 = arith.mulf %cst_39, %132 : f32
    %c5 = arith.constant 5 : index
    %134 = memref.load %arg3[%c5] : memref<8xf32, #tpu.memory_space<smem>>
    memref.store %133, %arg3[%c5] : memref<8xf32, #tpu.memory_space<smem>>
    %cst_40 = arith.constant 0.000000e+00 : f32
    %c6 = arith.constant 6 : index
    %135 = memref.load %arg3[%c6] : memref<8xf32, #tpu.memory_space<smem>>
    memref.store %cst_40, %arg3[%c6] : memref<8xf32, #tpu.memory_space<smem>>
    %cst_41 = arith.constant 0.000000e+00 : f32
    %c7 = arith.constant 7 : index
    %136 = memref.load %arg3[%c7] : memref<8xf32, #tpu.memory_space<smem>>
    memref.store %cst_41, %arg3[%c7] : memref<8xf32, #tpu.memory_space<smem>>
    return
  }
}

</mosaic_0001>

<llo_original>
// kernel: tpu_custom_call.1
$region0: #{tpu_custom_call.1}
  #allocation0 [shape = 'u32[]', space=smem, size = 0x4, offset = 0x4, fixed_abs, tag = 'smem constant byte address 0x4 - core index']
  #allocation1 [shape = 'u32[72,128]{1,0:T(1,128)}', space=vmem, size = 0x9000, scoped, tag = 'internal scratch']
  %s0 = inlined_call_operand.hbm [shape: f32[8,27], index: 0, kind: input, shape index: {}]
  %s1 = inlined_call_operand.hbm [shape: f32[24,64], index: 1, kind: input, shape index: {}]
  %s2 = inlined_call_operand.hbm [shape: f32[8,128], index: 2, kind: output, shape index: {0}]
  %s3 = inlined_call_operand.hbm [shape: f32[8], index: 3, kind: output, shape index: {1}]
  %4 = xla_tuple %s2, %s3
  %s5 = sld [smem:[#allocation0]]
  $region34: #{tpu_custom_call.1} parent=0
    _
  %s7 = ssub.s32 1, %s5
  %s8 = scalar_select 0, %s7, %s5
  $region1: #{tpu_custom_call.1} parent=0
    #allocation2 [shape = 'u8[4096]{0}', space=vmem, size = 0x1000, scoped, tag = 'input window, operand 0, single buffered']
    #allocation3 [shape = 's32[1]{0}', space=sflag, size = 0x4, scoped, tag = 'scoped memory for tpu_custom_call.1']
    #allocation4 [shape = 's32[1]{0}', space=sflag, size = 0x4, scoped, tag = 'scoped memory for tpu_custom_call.1']
    #allocation5 [shape = 's32[1]{0}', space=sflag, size = 0x4, scoped, tag = 'scoped memory for tpu_custom_call.1']
    #allocation6 [shape = 'u8[12288]{0}', space=vmem, size = 0x3000, scoped, tag = 'input window, operand 1, single buffered']
    #allocation7 [shape = 's32[1]{0}', space=sflag, size = 0x4, scoped, tag = 'scoped memory for tpu_custom_call.1']
    #allocation8 [shape = 'u8[4096]{0}', space=vmem, size = 0x1000, scoped, tag = 'output window, operand 0, single buffered']
    #allocation9 [shape = 'u8[512]{0}', space=smem, size = 0x200, scoped, tag = 'output window, operand 1, single buffered']
    %9 = vsyncpa [#allocation3], 0
    %10 = vsyncpa [#allocation7], 0
    %11 = vsyncpa [#allocation4], 0
    %12 = vsyncpa [#allocation5], 0
    // Predicated region
    $region2: #{tpu_custom_call.1} parent=1 // pred_check
      _
    $region3: #{tpu_custom_call.1} parent=1 // pred_check_branch
      %14 = sbr.rel (0) target = $region5
    $region4: #{tpu_custom_call.1} parent=1 // pred_region
      %16 = vsyncadd [#allocation3], 0
      %s18 = sshll.u32 %s0, 4
      %s19 = int_to_ptr.hbm [resolvable:$true] %s18
      %s20 = sshll.u32 [#allocation2], 4
      %s21 = int_to_ptr.vmem [resolvable:$true] %s20
      %23 = dma.hbm_to_vmem [thread:$0]  %s19, 128, %s21, [#allocation3]
    $region5: #{tpu_custom_call.1} parent=1 // pred_fallthru
      _
    // Predicated region
    $region6: #{tpu_custom_call.1} parent=1 // pred_check
      _
    $region7: #{tpu_custom_call.1} parent=1 // pred_check_branch
      %25 = sbr.rel (0) target = $region9
    $region8: #{tpu_custom_call.1} parent=1 // pred_region
      %27 = vsyncadd [#allocation7], 0
      %s28 = sshll.u32 %s1, 4
      %s29 = int_to_ptr.hbm [resolvable:$true] %s28
      %s30 = sshll.u32 [#allocation6], 4
      %s31 = int_to_ptr.vmem [resolvable:$true] %s30
      %36 = dma.hbm_to_vmem [thread:$0]  %s29, 384, %s31, [#allocation7], 128, 128, 8
    $region9: #{tpu_custom_call.1} parent=1 // pred_fallthru
      _
    // Predicated region
    $region10: #{tpu_custom_call.1} parent=1 // pred_check
      _
    $region11: #{tpu_custom_call.1} parent=1 // pred_check_branch
      %38 = sbr.rel (0) target = $region13
    $region12: #{tpu_custom_call.1} parent=1 // pred_region
      %40 = dma.done [#allocation3], 128
    $region13: #{tpu_custom_call.1} parent=1 // pred_fallthru
      _
    // Predicated region
    $region14: #{tpu_custom_call.1} parent=1 // pred_check
      _
    $region15: #{tpu_custom_call.1} parent=1 // pred_check_branch
      %42 = sbr.rel (0) target = $region17
    $region16: #{tpu_custom_call.1} parent=1 // pred_region
      %44 = dma.done [#allocation7], 384
    $region17: #{tpu_custom_call.1} parent=1 // pred_fallthru
      _
    %v45 = vld [vmem:[#allocation2] sm:$0xff]
    %v46 = vld [vmem:[#allocation6] sm:$0xff]
    %v47 = vld [vmem:[#allocation6 + $0x8] sm:$0xff]
    %v48 = vld [vmem:[#allocation6 + $0x10] sm:$0xff]
    %vm49 = vcmask 195584
    %v51 = vsel %vm49, %v45, 0
    %53 = vmatpush.msra.mxu0 0.0
    %54 = vmatpush.msra.mxu0 0.0
    %55 = vmatpush.msra.mxu0 0.0
    %56 = vmatpush.msra.mxu0 0.0
    %57 = vmatpush.msra.mxu0 0.0
    %58 = vmatpush.msra.mxu0 0.0
    %59 = vmatpush.msra.mxu0 0.0
    %60 = vmatpush.msra.mxu0 0.0
    %61 = vmatpush.msra.mxu0 0.0
    %62 = vmatpush.msra.mxu0 0.0
    %63 = vmatpush.msra.mxu0 0.0
    %64 = vmatpush.msra.mxu0 0.0
    %65 = vmatpush.msra.mxu0 0.0
    %66 = vmatpush.msra.mxu0 %v48
    %67 = vmatpush.msra.mxu0 %v47
    %68 = vmatpush.msra.mxu0 %v46
    %69 = vmatmul.f32.gmra.mxu0 %v51
    %v70 = vpop.f32.mrf.mxu0
    %v71 = vadd.f32 0.0, %v70
    %72 = vdwg.mxu0
    %v73 = vadd.f32 %v71, 1e-08
    %v74 = vsub.f32 1.0, %v71
    %76 = vrot.lane.b32.xlu0 %v73, 48
    %v77 = vpop.permute.xlu0 %76
    %v79 = vmul.f32 %v71, %v77
    %81 = vrot.lane.b32.xlu0 %v79, 80
    %v82 = vpop.permute.xlu0 %81
    %vm84 = vcmask 130048
    %v85 = vsel %vm84, %v82, 0.0
    %86 = vadd.xlane.f32.xlu0 %v85
    %v87 = vpop.xlane.xlu0 %86
    %v88 = vsub.f32 1.0, %v87
    %v89 = vrcp.pop %v87
    %v90 = vmul.f32 %v74, %v77
    %v91 = vadd.f32 %v88, 1e-08
    %v92 = vrcp.pop %v91
    %v93 = vmul.f32 %v90, %v92
    %v94 = vsub.f32 %v89, 1.0
    %v95 = vmul.f32 %v94, %v93
    %vm96 = vcmask 7168
    %v97 = vsel %vm96, %v89, 0.0
    %98 = vadd.xlane.f32.xlu0 %v97
    %v99 = vpop.xlane.xlu0 %98
    %v100 = vrot.slane %v99, 4
    %v101 = vadd.f32 %v99, %v100
    %v102 = vrot.slane %v101, 2
    %v103 = vadd.f32 %v101, %v102
    %v104 = vrot.slane %v103, 1
    %v105 = vadd.f32 %v103, %v104
    %s106 = vtos %v105
    %107 = vrot.lane.b32.xlu0 %v73, 80
    %v108 = vpop.permute.xlu0 %107
    %v110 = vmul.f32 %v71, %v108
    %v111 = vsel %vm84, %v110, 0.0
    %112 = vadd.xlane.f32.xlu0 %v111
    %v113 = vpop.xlane.xlu0 %112
    %v114 = vrcp.pop %v113
    %v115 = vmul.f32 %v110, %v114
    %v116 = vadd.f32 %v115, 1e-08
    %v117 = vlog2.pop %v116
    %v118 = vmul.f32 %v117, 0.6931472
    %119 = vset.pattern.permute.xlu0 24
    %120 = vperm.xlu0 %119, %v45
    %v121 = vpop.permute.xlu0 %120
    %v123 = vmul.f32 %v71, %v121
    %125 = vrot.lane.b32.xlu0 %v123, 112
    %v126 = vpop.permute.xlu0 %125
    %v128 = vsel %vm84, %v126, 0.0
    %129 = vadd.xlane.f32.xlu0 %v128
    %v130 = vpop.xlane.xlu0 %129
    %v131 = vsub.f32 1.0, %v130
    %v132 = vsel %vm96, %v131, %v130
    %v133 = vadd.f32 %v132, 1e-08
    %v134 = vlog2.pop %v133
    %v135 = vmul.f32 %v134, 0.6931472
    %137 = vrot.lane.b32.xlu0 %v71, 16
    %v138 = vpop.permute.xlu0 %137
    %v140 = vmul.f32 %v95, %v138
    %141 = vrot.lane.b32.xlu0 %v71, 32
    %v142 = vpop.permute.xlu0 %141
    %v144 = vmul.f32 %v140, %v142
    %146 = vrot.lane.b32.xlu0 %v74, 32
    %v147 = vpop.permute.xlu0 %146
    %v149 = vmul.f32 %v140, %v147
    %150 = vset.pattern.permute.xlu0 25
    %151 = vperm.xlu0 %150, %v45
    %v152 = vpop.permute.xlu0 %151
    %v154 = vmul.f32 %v149, %v152
    %156 = vrot.lane.b32.xlu0 %v154, 80
    %v157 = vpop.permute.xlu0 %156
    %v159 = vsel %vm84, %v157, 0.0
    %160 = vadd.xlane.f32.xlu0 %v159
    %v161 = vpop.xlane.xlu0 %160
    %v162 = vrot.slane %v161, 4
    %v163 = vadd.f32 %v161, %v162
    %v164 = vrot.slane %v163, 2
    %v165 = vadd.f32 %v163, %v164
    %v166 = vrot.slane %v165, 1
    %v167 = vadd.f32 %v165, %v166
    %s168 = vtos %v167
    %170 = vrot.lane.b32.xlu0 %v144, 80
    %v171 = vpop.permute.xlu0 %170
    %v173 = vsel %vm84, %v171, 0.0
    %174 = vadd.xlane.f32.xlu0 %v173
    %v175 = vpop.xlane.xlu0 %174
    %v176 = vrot.slane %v175, 4
    %v177 = vadd.f32 %v175, %v176
    %v178 = vrot.slane %v177, 2
    %v179 = vadd.f32 %v177, %v178
    %v180 = vrot.slane %v179, 1
    %v181 = vadd.f32 %v179, %v180
    %s182 = vtos %v181
    %184 = vrot.lane.b32.xlu0 %v149, 80
    %v185 = vpop.permute.xlu0 %184
    %v187 = vsel %vm84, %v185, 0.0
    %188 = vadd.xlane.f32.xlu0 %v187
    %v189 = vpop.xlane.xlu0 %188
    %v190 = vrot.slane %v189, 4
    %v191 = vadd.f32 %v189, %v190
    %v192 = vrot.slane %v191, 2
    %v193 = vadd.f32 %v191, %v192
    %v194 = vrot.slane %v193, 1
    %v195 = vadd.f32 %v193, %v194
    %s196 = vtos %v195
    %198 = vrot.lane.b32.xlu0 %v140, 80
    %v199 = vpop.permute.xlu0 %198
    %v201 = vsel %vm84, %v199, 0.0
    %202 = vadd.xlane.f32.xlu0 %v201
    %v203 = vpop.xlane.xlu0 %202
    %v204 = vrot.slane %v203, 4
    %v205 = vadd.f32 %v203, %v204
    %v206 = vrot.slane %v205, 2
    %v207 = vadd.f32 %v205, %v206
    %v208 = vrot.slane %v207, 1
    %v209 = vadd.f32 %v207, %v208
    %s210 = vtos %v209
    %v211 = vsub.f32 1.0, %v45
    %212 = vset.pattern.permute.xlu0 26
    %213 = vperm.xlu0 %212, %v45
    %v214 = vpop.permute.xlu0 %213
    %v216 = vmul.f32 %v214, %v123
    %218 = vrot.lane.b32.xlu0 %v216, 96
    %v219 = vpop.permute.xlu0 %218
    %v221 = vsel %vm84, %v219, 0.0
    %222 = vadd.xlane.f32.xlu0 %v221
    %v223 = vpop.xlane.xlu0 %222
    %225 = vset.pattern.permute.xlu0 26
    %226 = vperm.xlu0 %225, %v211
    %v227 = vpop.permute.xlu0 %226
    %v229 = vmul.f32 %v227, %v123
    %231 = vrot.lane.b32.xlu0 %v229, 96
    %v232 = vpop.permute.xlu0 %231
    %v234 = vsel %vm84, %v232, 0.0
    %235 = vadd.xlane.f32.xlu0 %v234
    %v236 = vpop.xlane.xlu0 %235
    %237 = vrot.lane.b32.xlu0 %v123, 96
    %v238 = vpop.permute.xlu0 %237
    %v240 = vsel %vm84, %v238, 0.0
    %241 = vadd.xlane.f32.xlu0 %v240
    %v242 = vpop.xlane.xlu0 %241
    %v243 = vmul.f32 %v45, %v236
    %v244 = vsel %vm96, %v236, 0.0
    %245 = vadd.xlane.f32.xlu0 %v244
    %v246 = vpop.xlane.xlu0 %245
    %v247 = vrot.slane %v246, 4
    %v248 = vadd.f32 %v246, %v247
    %v249 = vrot.slane %v248, 2
    %v250 = vadd.f32 %v248, %v249
    %v251 = vrot.slane %v250, 1
    %v252 = vadd.f32 %v250, %v251
    %s253 = vtos %v252
    %255 = vrot.lane.b32.xlu0 %v243, 103
    %v256 = vpop.permute.xlu0 %255
    %v258 = vsel %vm96, %v256, 0.0
    %259 = vadd.xlane.f32.xlu0 %v258
    %v260 = vpop.xlane.xlu0 %259
    %v261 = vrot.slane %v260, 4
    %v262 = vadd.f32 %v260, %v261
    %v263 = vrot.slane %v262, 2
    %v264 = vadd.f32 %v262, %v263
    %v265 = vrot.slane %v264, 1
    %v266 = vadd.f32 %v264, %v265
    %s267 = vtos %v266
    %v268 = vsel %vm96, %v223, 0.0
    %269 = vadd.xlane.f32.xlu0 %v268
    %v270 = vpop.xlane.xlu0 %269
    %v271 = vrot.slane %v270, 4
    %v272 = vadd.f32 %v270, %v271
    %v273 = vrot.slane %v272, 2
    %v274 = vadd.f32 %v272, %v273
    %v275 = vrot.slane %v274, 1
    %v276 = vadd.f32 %v274, %v275
    %s277 = vtos %v276
    %v278 = vsel %vm96, %v242, 0.0
    %279 = vadd.xlane.f32.xlu0 %v278
    %v280 = vpop.xlane.xlu0 %279
    %v281 = vrot.slane %v280, 4
    %v282 = vadd.f32 %v280, %v281
    %v283 = vrot.slane %v282, 2
    %v284 = vadd.f32 %v282, %v283
    %v285 = vrot.slane %v284, 1
    %v286 = vadd.f32 %v284, %v285
    %s287 = vtos %v286
    %289 = vrot.lane.b32.xlu0 %v118, 16
    %v290 = vpop.permute.xlu0 %289
    %293 = vrot.lane.b32.xlu0 %v135, 32
    %v294 = vpop.permute.xlu0 %293
    %v296 = vsel %vm84, %v115, %v290
    %vm297 = vcmask 261120
    %v298 = vsel %vm297, %v296, %v294
    %vm299 = vcmask 277504
    %v300 = vsel %vm299, %v298, 0.0
    %301 = vst [vmem:[#allocation8] sm:$0xff] %v300
    %s302 = sadd.f32 %s168, %s267
    %s303 = smul.f32 %s302, -2e-05
    %s304 = scalar_lea.smem [#allocation9], 0
    %305 = sst [smem:[%s304]] %s303
    %s306 = sadd.f32 %s182, %s277
    %s307 = sadd.f32 %s210, %s287
    %s308 = smul.f32 %s307, 0.05
    %s309 = ssub.f32 %s306, %s308
    %s310 = scalar_lea.smem [#allocation9], 1
    %311 = sst [smem:[%s310]] %s309
    %s312 = smul.f32 %s307, 0.75
    %s313 = ssub.f32 %s312, %s196
    %s314 = ssub.f32 %s313, %s253
    %s315 = smul.f32 %s314, 0.14285715
    %s316 = scalar_lea.smem [#allocation9], 2
    %317 = sst [smem:[%s316]] %s315
    %s318 = scalar_lea.smem [#allocation9], 3
    %319 = sst [smem:[%s318]] %s106
    %s320 = smul.f32 %s287, 0.05
    %s321 = ssub.f32 %s277, %s320
    %s322 = scalar_lea.smem [#allocation9], 4
    %323 = sst [smem:[%s322]] %s321
    %s324 = smul.f32 %s287, 0.75
    %s325 = ssub.f32 %s324, %s253
    %s326 = smul.f32 %s325, 0.14285715
    %s327 = scalar_lea.smem [#allocation9], 5
    %328 = sst [smem:[%s327]] %s326
    %s329 = scalar_lea.smem [#allocation9], 6
    %330 = sst [smem:[%s329]] 0.0
    %s331 = scalar_lea.smem [#allocation9], 7
    %332 = sst [smem:[%s331]] 0.0
    // Predicated region
    $region18: #{tpu_custom_call.1} parent=1 // pred_check
      _
    $region19: #{tpu_custom_call.1} parent=1 // pred_check_branch
      %334 = sbr.rel (0) target = $region21
    $region20: #{tpu_custom_call.1} parent=1 // pred_region
      %336 = vsyncadd [#allocation4], 0
      %s338 = sshll.u32 [#allocation8], 4
      %s339 = int_to_ptr.vmem [resolvable:$true] %s338
      %s340 = sshll.u32 %s2, 4
      %s341 = int_to_ptr.hbm [resolvable:$true] %s340
      %343 = dma.vmem_to_hbm [thread:$0]  %s339, 128, %s341, [#allocation4]
    $region21: #{tpu_custom_call.1} parent=1 // pred_fallthru
      _
    // Predicated region
    $region22: #{tpu_custom_call.1} parent=1 // pred_check
      _
    $region23: #{tpu_custom_call.1} parent=1 // pred_check_branch
      %345 = sbr.rel (0) target = $region25
    $region24: #{tpu_custom_call.1} parent=1 // pred_region
      %347 = vsyncadd [#allocation5], 0
      %s349 = sshll.u32 %s3, 4
      %s350 = int_to_ptr.hbm [resolvable:$true] %s349
      %352 = dma.smem_to_hbm [#allocation9], 16, %s350, [#allocation5]
    $region25: #{tpu_custom_call.1} parent=1 // pred_fallthru
      _
    // Predicated region
    $region26: #{tpu_custom_call.1} parent=1 // pred_check
      _
    $region27: #{tpu_custom_call.1} parent=1 // pred_check_branch
      %354 = sbr.rel (0) target = $region29
    $region28: #{tpu_custom_call.1} parent=1 // pred_region
      %356 = dma.done [#allocation4], 128
    $region29: #{tpu_custom_call.1} parent=1 // pred_fallthru
      _
    // Predicated region
    $region30: #{tpu_custom_call.1} parent=1 // pred_check
      _
    $region31: #{tpu_custom_call.1} parent=1 // pred_check_branch
      %358 = sbr.rel (0) target = $region33
    $region32: #{tpu_custom_call.1} parent=1 // pred_region
      %360 = dma.done [#allocation5], 16
    $region33: #{tpu_custom_call.1} parent=1 // pred_fallthru
      _
    %361 = sfence
    %362 = vsyncpa [#allocation3], 1
    %363 = vsyncpa [#allocation7], 1
    %364 = vsyncpa [#allocation4], 1
    %365 = vsyncpa [#allocation5], 1

</llo_original>
